<compile_context>
chip_gen: v5e
topology: v5e:2x2
jax: 0.10.0
libtpu: 0.0.40
codegen_flags: <defaults>
</compile_context>

<pallas_src>
import functools

import jax
import jax.numpy as jnp
from jax.experimental import pallas as pl
from jax.experimental.pallas import tpu as pltpu


def _pool_sum_kernel(x1_ref, x2_ref, sums_ref, *, C):
    """Accumulate per-channel spatial sums into the resident output block.

    x1_ref, x2_ref : (1, C, TS)  current spatial tile (channels on sublanes)
    sums_ref       : (1, 2C, 1)  f32 accumulator; same block for every s tile
    """
    @pl.when(pl.program_id(1) == 0)
    def _init():
        sums_ref[...] = jnp.zeros_like(sums_ref)

    x1 = x1_ref[0].astype(jnp.float32)                               # (C, TS)
    x2 = x2_ref[0].astype(jnp.float32)
    sums_ref[0, :C, :] += jnp.sum(x1, axis=-1, keepdims=True)        # (C, 1)
    sums_ref[0, C:, :] += jnp.sum(x2, axis=-1, keepdims=True)


def _gate_kernel(g1_ref, g2_ref, x1_ref, x2_ref, out_ref, *, C):
    """out[:C, :] = x1 * g1 ; out[C:, :] = x2 * g2  (one spatial tile).

    g1_ref, g2_ref : (1, C, 1)   per-batch channel gates (broadcast over lanes)
    x1_ref, x2_ref : (1, C, TS)
    out_ref        : (1, 2C, TS)
    """
    g1 = g1_ref[0]                                                   # (C, 1)
    g2 = g2_ref[0]
    x1 = x1_ref[0].astype(jnp.float32)
    x2 = x2_ref[0].astype(jnp.float32)
    out_ref[0, :C, :] = (x1 * g1).astype(out_ref.dtype)
    out_ref[0, C:, :] = (x2 * g2).astype(out_ref.dtype)


def _choose_spatial_tile(S, C, itemsize, max_tile=None):
    """Largest multiple of 128 that divides S, under a conservative VMEM budget."""
    if max_tile is None:
        # Double-buffered footprint per grid step: 2 * (x1 + x2 + out) tiles
        #                                        = 2 * 4 * C * TS * itemsize.
        # 8 MiB is far below every generation's scoped-VMEM default (incl. v7x).
        budget = 8 * 1024 * 1024
        max_tile = max(128, (budget // (8 * C * itemsize)) // 128 * 128)
    if S <= max_tile:
        return S                     # full-extent block is always legal
    if S % 128 != 0:
        return S                     # irregular spatial extent: one block per batch
    best = 128
    t = 256
    while t <= max_tile:
        if S % t == 0:
            best = t
        t += 128
    return best


def channelatt_forward(x1_ncdhw, x2_ncdhw, w_conv, w_fc1, w_fc2, w_fc3,
                       *, max_spatial_tile=None):
    """x*_ncdhw: (N, C, D, H, W). Weights in PyTorch (out, in) convention."""
    N, C, D, H, W = x1_ncdhw.shape
    S = D * H * W

    # Free reshapes (no transpose): channels on sublanes, spatial on lanes.
    x1 = x1_ncdhw.reshape(N, C, S)
    x2 = x2_ncdhw.reshape(N, C, S)

    TS = _choose_spatial_tile(S, C, x1.dtype.itemsize, max_spatial_tile)
    n_s = S // TS if S % TS == 0 else 1
    if n_s == 1:
        TS = S

    # ---- Pass 1: tiled per-batch channel sums over the spatial axis. -------
    sums = pl.pallas_call(
        functools.partial(_pool_sum_kernel, C=C),
        out_shape=jax.ShapeDtypeStruct((N, 2 * C, 1), jnp.float32),
        grid=(N, n_s),
        in_specs=[
            pl.BlockSpec((1, C, TS), lambda b, s: (b, 0, s)),
            pl.BlockSpec((1, C, TS), lambda b, s: (b, 0, s)),
        ],
        out_specs=pl.BlockSpec((1, 2 * C, 1), lambda b, s: (b, 0, 0)),
        compiler_params=pltpu.CompilerParams(
            dimension_semantics=("parallel", "arbitrary")),
    )(x1, x2)

    # ---- Tiny SE bottleneck, once per batch (trivial JAX glue). ------------
    # Conv folded through the pool: mean_S(conv(cat)) == mean_S(cat) @ Wc^T.
    hi = jax.lax.Precision.HIGHEST
    pooled = sums[:, :, 0] / jnp.float32(S)                      # (N, 2C)
    t = jnp.dot(pooled, w_conv.T, precision=hi)                  # (N, C)
    c2 = jnp.dot(t, w_fc1.T, precision=hi)                       # (N, C//8)
    g1 = jax.nn.sigmoid(jnp.dot(c2, w_fc2.T, precision=hi))      # (N, C)
    g2 = jax.nn.sigmoid(jnp.dot(c2, w_fc3.T, precision=hi))      # (N, C)
    g1 = g1.astype(jnp.float32)[:, :, None]                      # (N, C, 1)
    g2 = g2.astype(jnp.float32)[:, :, None]

    # ---- Pass 2: streaming, lane-dense gating (pure load-mul-store). -------
    out = pl.pallas_call(
        functools.partial(_gate_kernel, C=C),
        out_shape=jax.ShapeDtypeStruct((N, 2 * C, S), x1.dtype),
        grid=(N, n_s),
        in_specs=[
            pl.BlockSpec((1, C, 1), lambda b, s: (b, 0, 0)),     # g1
            pl.BlockSpec((1, C, 1), lambda b, s: (b, 0, 0)),     # g2
            pl.BlockSpec((1, C, TS), lambda b, s: (b, 0, s)),    # x1 tile
            pl.BlockSpec((1, C, TS), lambda b, s: (b, 0, s)),    # x2 tile
        ],
        out_specs=pl.BlockSpec((1, 2 * C, TS), lambda b, s: (b, 0, s)),
        compiler_params=pltpu.CompilerParams(
            dimension_semantics=("parallel", "parallel")),
    )(g1, g2, x1, x2)

    # Free reshape back to NCDHW.
    return out.reshape(N, 2 * C, D, H, W)


def channelatt_reference(x1, x2, w_conv, w_fc1, w_fc2, w_fc3):
    """Pure-JAX reference mirroring the PyTorch forward (NCDHW)."""
    hi = jax.lax.Precision.HIGHEST
    cat = jnp.concatenate([x1, x2], axis=1)                          # (N, 2C, D, H, W)
    c1 = jnp.einsum('oc,ncdhw->nodhw', w_conv, cat, precision=hi)
    avg = jnp.mean(c1, axis=(2, 3, 4))                               # (N, C)
    c2 = jnp.einsum('rc,nc->nr', w_fc1, avg, precision=hi)           # (N, C//8)
    c3 = jax.nn.sigmoid(jnp.einsum('cr,nr->nc', w_fc2, c2, precision=hi))
    c4 = jax.nn.sigmoid(jnp.einsum('cr,nr->nc', w_fc3, c2, precision=hi))
    c3 = c3[:, :, None, None, None]
    c4 = c4[:, :, None, None, None]
    return jnp.concatenate([x1 * c3, x2 * c4], axis=1)


if __name__ == "__main__":
    key = jax.random.PRNGKey(0)
    N, C, D, H, W = 2, 16, 16, 16, 16        # out_ch = 16 so out_ch // 8 = 2; S = 4096
    k1, k2, k3, k4, k5, k6 = jax.random.split(key, 6)

    input1 = jax.random.normal(k1, (N, C, D, H, W), jnp.float32)
    input2 = jax.random.normal(k2, (N, C, D, H, W), jnp.float32)

    # Deterministic synthetic weights (PyTorch Conv3d k=1 weights squeezed to 2-D).
    w_conv = 0.1 * jax.random.normal(k3, (C, 2 * C), jnp.float32)
    w_fc1 = 0.1 * jax.random.normal(k4, (C // 8, C), jnp.float32)
    w_fc2 = 0.1 * jax.random.normal(k5, (C, C // 8), jnp.float32)
    w_fc3 = 0.1 * jax.random.normal(k6, (C, C // 8), jnp.float32)

    ref = channelatt_reference(input1, input2, w_conv, w_fc1, w_fc2, w_fc3)

    # Default path: one spatial tile per batch (S = 4096 fits VMEM easily).
    out = channelatt_forward(input1, input2, w_conv, w_fc1, w_fc2, w_fc3)
    out = jax.block_until_ready(out)
    assert out.shape == (N, 2 * C, D, H, W), out.shape
    assert jnp.allclose(out, ref, atol=1e-4, rtol=1e-4), \
        float(jnp.max(jnp.abs(out - ref)))

    # Tiled path: force 4 spatial tiles of 1024 lanes (exercises the pipelined
    # reduction accumulator and multi-tile gating).
    out_tiled = channelatt_forward(input1, input2, w_conv, w_fc1, w_fc2, w_fc3,
                                   max_spatial_tile=1024)
    out_tiled = jax.block_until_ready(out_tiled)
    assert jnp.allclose(out_tiled, ref, atol=1e-4, rtol=1e-4), \
        float(jnp.max(jnp.abs(out_tiled - ref)))

    print("KERNEL_OK")
</pallas_src>

<mosaic_0001>
module attributes {stable_mosaic.version = 11 : i64} {
  func.func @_pool_sum_kernel(%arg0: i32, %arg1: i32, %arg2: memref<1x16x4096xf32, #tpu.memory_space<vmem>>, %arg3: memref<1x16x4096xf32, #tpu.memory_space<vmem>>, %arg4: memref<1x32x1xf32, #tpu.memory_space<vmem>>) attributes {dimension_semantics = [#tpu.dimension_semantics<parallel>, #tpu.dimension_semantics<arbitrary>], iteration_bounds = array<i64: 2, 1>, scalar_prefetch = 0 : i64, scratch_operands = 0 : i64, tpu.core_type = #tpu.core_type<tc>, window_params = [{transform_indices = @transform_0, window_bounds = array<i64: 1, 16, 4096>}, {transform_indices = @transform_1, window_bounds = array<i64: 1, 16, 4096>}, {transform_indices = @transform_2, window_bounds = array<i64: 1, 32, 1>}]} {
    %c0_i32 = arith.constant 0 : i32
    %0 = arith.cmpi eq, %arg1, %c0_i32 : i32
    %1 = arith.extui %0 : i1 to i32
    %c0_i32_0 = arith.constant 0 : i32
    %2 = arith.cmpi ne, %1, %c0_i32_0 : i32
    scf.if %2 {
      %cst_18 = arith.constant 0.000000e+00 : f32
      %23 = vector.broadcast %cst_18 : f32 to vector<1x32x1xf32>
      %c0_19 = arith.constant 0 : index
      %c0_20 = arith.constant 0 : index
      %c0_21 = arith.constant 0 : index
      %24 = vector.load %arg4[%c0_19, %c0_20, %c0_21] : memref<1x32x1xf32, #tpu.memory_space<vmem>>, vector<1x32x1xf32>
      tpu.vector_store %arg4[%c0_19, %c0_20, %c0_21], %23 {strides = array<i32>} : memref<1x32x1xf32, #tpu.memory_space<vmem>>, vector<1x32x1xf32>,
    } else {
    }
    %c0 = arith.constant 0 : index
    %c0_1 = arith.constant 0 : index
    %c0_2 = arith.constant 0 : index
    %3 = vector.load %arg2[%c0, %c0_1, %c0_2] : memref<1x16x4096xf32, #tpu.memory_space<vmem>>, vector<1x16x4096xf32>
    %4 = vector.shape_cast %3 : vector<1x16x4096xf32> to vector<16x4096xf32>
    %c0_3 = arith.constant 0 : index
    %c0_4 = arith.constant 0 : index
    %c0_5 = arith.constant 0 : index
    %5 = vector.load %arg3[%c0_3, %c0_4, %c0_5] : memref<1x16x4096xf32, #tpu.memory_space<vmem>>, vector<1x16x4096xf32>
    %6 = vector.shape_cast %5 : vector<1x16x4096xf32> to vector<16x4096xf32>
    %c0_6 = arith.constant 0 : index
    %c0_7 = arith.constant 0 : index
    %c0_8 = arith.constant 0 : index
    %7 = vector.load %arg4[%c0_6, %c0_7, %c0_8] : memref<1x32x1xf32, #tpu.memory_space<vmem>>, vector<1x16x1xf32>
    %8 = vector.shape_cast %7 : vector<1x16x1xf32> to vector<16x1xf32>
    %cst = arith.constant dense<0.000000e+00> : vector<16xf32>
    %9 = vector.multi_reduction <add>, %4, %cst [1] : vector<16x4096xf32> to vector<16xf32>
    %10 = vector.shape_cast %9 : vector<16xf32> to vector<16x1xf32>
    %11 = arith.addf %8, %10 : vector<16x1xf32>
    %c0_9 = arith.constant 0 : index
    %c0_10 = arith.constant 0 : index
    %c0_11 = arith.constant 0 : index
    %12 = vector.load %arg4[%c0_9, %c0_10, %c0_11] : memref<1x32x1xf32, #tpu.memory_space<vmem>>, vector<1x16x1xf32>
    %13 = vector.shape_cast %12 : vector<1x16x1xf32> to vector<16x1xf32>
    %14 = vector.shape_cast %11 : vector<16x1xf32> to vector<1x16x1xf32>
    tpu.vector_store %arg4[%c0_9, %c0_10, %c0_11], %14 {strides = array<i32>} : memref<1x32x1xf32, #tpu.memory_space<vmem>>, vector<1x16x1xf32>,
    %c0_12 = arith.constant 0 : index
    %c16 = arith.constant 16 : index
    %c0_13 = arith.constant 0 : index
    %15 = vector.load %arg4[%c0_12, %c16, %c0_13] : memref<1x32x1xf32, #tpu.memory_space<vmem>>, vector<1x16x1xf32>
    %16 = vector.shape_cast %15 : vector<1x16x1xf32> to vector<16x1xf32>
    %cst_14 = arith.constant dense<0.000000e+00> : vector<16xf32>
    %17 = vector.multi_reduction <add>, %6, %cst_14 [1] : vector<16x4096xf32> to vector<16xf32>
    %18 = vector.shape_cast %17 : vector<16xf32> to vector<16x1xf32>
    %19 = arith.addf %16, %18 : vector<16x1xf32>
    %c0_15 = arith.constant 0 : index
    %c16_16 = arith.constant 16 : index
    %c0_17 = arith.constant 0 : index
    %20 = vector.load %arg4[%c0_15, %c16_16, %c0_17] : memref<1x32x1xf32, #tpu.memory_space<vmem>>, vector<1x16x1xf32>
    %21 = vector.shape_cast %20 : vector<1x16x1xf32> to vector<16x1xf32>
    %22 = vector.shape_cast %19 : vector<16x1xf32> to vector<1x16x1xf32>
    tpu.vector_store %arg4[%c0_15, %c16_16, %c0_17], %22 {strides = array<i32>} : memref<1x32x1xf32, #tpu.memory_space<vmem>>, vector<1x16x1xf32>,
    return
  }
  func.func @transform_0(%arg0: i32, %arg1: i32) -> (i32, i32, i32) {
    %c0_i32 = arith.constant 0 : i32
    %c0_i32_0 = arith.constant 0 : i32
    return %arg0, %c0_i32, %arg1 : i32, i32, i32
  }
  func.func @transform_1(%arg0: i32, %arg1: i32) -> (i32, i32, i32) {
    %c0_i32 = arith.constant 0 : i32
    %c0_i32_0 = arith.constant 0 : i32
    return %arg0, %c0_i32, %arg1 : i32, i32, i32
  }
  func.func @transform_2(%arg0: i32, %arg1: i32) -> (i32, i32, i32) {
    %c0_i32 = arith.constant 0 : i32
    %c0_i32_0 = arith.constant 0 : i32
    %c0_i32_1 = arith.constant 0 : i32
    return %arg0, %c0_i32, %c0_i32_0 : i32, i32, i32
  }
}

</mosaic_0001>

<llo_original>
// kernel: tpu_custom_call.1
$region0: #{tpu_custom_call.1}
  #allocation0 [shape = 'u32[]', space=smem, size = 0x4, offset = 0x4, fixed_abs, tag = 'smem constant byte address 0x4 - core index']
  #allocation1 [shape = 'u32[72,128]{1,0:T(1,128)}', space=vmem, size = 0x9000, scoped, tag = 'internal scratch']
  %s0 = inlined_call_operand.hbm [shape: f32[2,16,4096], index: 0, kind: input, shape index: {}]
  %s1 = inlined_call_operand.hbm [shape: f32[2,16,4096], index: 1, kind: input, shape index: {}]
  %s2 = inlined_call_operand.vmem [shape: f32[2,32,1], index: 2, kind: output, shape index: {}]
  %s3 = sld [smem:[#allocation0]]
  $region53: #{tpu_custom_call.1} parent=0
    _
  %s5 = ssub.s32 1, %s3
  %s6 = scalar_select 0, %s5, %s3
  $region1: #{tpu_custom_call.1} parent=0
    #allocation2 [shape = 'u8[524288]{0}', space=vmem, size = 0x80000, scoped, tag = 'input window, operand 0']
    #allocation3 [shape = 's32[2]{0}', space=sflag, size = 0x8, scoped, tag = 'scoped memory for tpu_custom_call.1']
    #allocation4 [shape = 'u8[524288]{0}', space=vmem, size = 0x80000, scoped, tag = 'input window, operand 1']
    #allocation5 [shape = 's32[2]{0}', space=sflag, size = 0x8, scoped, tag = 'scoped memory for tpu_custom_call.1']
    %7 = vsyncpa [#allocation3], 0
    %s8 = scalar_lea.sflag [#allocation3], 1
    %9 = vsyncpa %s8, 0
    %10 = vsyncpa [#allocation5], 0
    %s11 = scalar_lea.sflag [#allocation5], 1
    %12 = vsyncpa %s11, 0
    loop: start=0, step=1, limit=4
    $region2: #{tpu_custom_call.1} parent=1 // loop_pre_header
      _
    $region3: #{tpu_custom_call.1} parent=1 // loop_header
      %s14 = sphi 0, %s18
      %p15 = scmp.ge.s32.totalorder %s14, 4
      %s21 = sphi 0, %s33
      %s22 = sphi 0, %s29
      %s23 = sphi 0, %s21
      %s24 = sphi 0, %s22
      %s25 = sphi 0, %s23
      %s26 = sphi 0, %s24
      %s38 = sphi 0, %s40
      %s41 = sphi 0, %s38
      %s42 = sphi 0, %s41
      %s58 = sphi 0, %s42
      %s66 = sphi 0, %s68
      %s69 = sphi 0, %s66
      %s70 = sphi 0, %s69
      %s86 = sphi 0, %s70
      %s92 = sphi 0, %s94
      %s95 = sphi 0, %s92
      %s96 = sphi 0, %s95
      %s112 = sphi 0, %s96
    $region4: #{tpu_custom_call.1} parent=1 // loop_header_branch
      %17 = sbr.rel (%p15) target = $region8
    $region5: #{tpu_custom_call.1} parent=1 // loop_body
      %s19 = ssub.s32 %s14, 1
      %s20 = ssub.s32 %s14, 2
      %s27 = sadd.s32 1, %s22
      %p28 = scmp.ge.s32.totalorder %s27, 1
      %s29 = scalar_select %p28, 0, %s27
      %s30 = sadd.s32 1, %s21
      %s31 = scalar_select %p28, %s30, %s21
      %p32 = scmp.ge.s32.totalorder %s31, 2
      %s33 = scalar_select %p32, 0, %s31
      %s34 = ssub.s32 %s21, %s33
      %s35 = ssub.s32 %s22, %s29
      %s36 = sor.u32 %s34, %s35
      %p37 = scmp.eq.s32.totalorder %s36, 0
      %s39 = sadd.s32 %s38, 1
      %s40 = scalar_select %p37, %s38, %s39
      %p43 = pneg %p37
      %p44 = scmp.eq.s32.totalorder %s14, 1
      %p45 = por %p43, %p44
      %p46 = scmp.ne.s32.totalorder %s38, %s41
      %p47 = scmp.eq.s32.totalorder %s14, 0
      %p48 = por %p46, %p47
      %p49 = scmp.ne.s32.totalorder %s38, %s41
      %p50 = scmp.eq.s32.totalorder %s19, 1
      %p51 = por %p49, %p50
      %p52 = scmp.ne.s32.totalorder %s41, %s42
      %p53 = scmp.eq.s32.totalorder %s19, 0
      %p54 = por %p52, %p53
      %p55 = scmp.ne.s32.totalorder %s41, %s42
      %p56 = scmp.eq.s32.totalorder %s20, 1
      %p57 = por %p55, %p56
      %p59 = scmp.ne.s32.totalorder %s42, %s58
      %p60 = scmp.eq.s32.totalorder %s20, 0
      %p61 = por %p59, %p60
      %s62 = ssub.s32 %s21, %s33
      %s63 = ssub.s32 %s22, %s29
      %s64 = sor.u32 %s62, %s63
      %p65 = scmp.eq.s32.totalorder %s64, 0
      %s67 = sadd.s32 %s66, 1
      %s68 = scalar_select %p65, %s66, %s67
      %p71 = pneg %p65
      %p72 = scmp.eq.s32.totalorder %s14, 1
      %p73 = por %p71, %p72
      %p74 = scmp.ne.s32.totalorder %s66, %s69
      %p75 = scmp.eq.s32.totalorder %s14, 0
      %p76 = por %p74, %p75
      %p77 = scmp.ne.s32.totalorder %s66, %s69
      %p78 = scmp.eq.s32.totalorder %s19, 1
      %p79 = por %p77, %p78
      %p80 = scmp.ne.s32.totalorder %s69, %s70
      %p81 = scmp.eq.s32.totalorder %s19, 0
      %p82 = por %p80, %p81
      %p83 = scmp.ne.s32.totalorder %s69, %s70
      %p84 = scmp.eq.s32.totalorder %s20, 1
      %p85 = por %p83, %p84
      %p87 = scmp.ne.s32.totalorder %s70, %s86
      %p88 = scmp.eq.s32.totalorder %s20, 0
      %p89 = por %p87, %p88
      %s90 = ssub.s32 %s21, %s33
      %p91 = scmp.eq.s32.totalorder %s90, 0
      %s93 = sadd.s32 %s92, 1
      %s94 = scalar_select %p91, %s92, %s93
      %p97 = pneg %p91
      %p98 = scmp.eq.s32.totalorder %s14, 1
      %p99 = por %p97, %p98
      %p100 = scmp.ne.s32.totalorder %s92, %s95
      %p101 = scmp.eq.s32.totalorder %s14, 0
      %p102 = por %p100, %p101
      %p103 = scmp.ne.s32.totalorder %s92, %s95
      %p104 = scmp.eq.s32.totalorder %s19, 1
      %p105 = por %p103, %p104
      %p106 = scmp.ne.s32.totalorder %s95, %s96
      %p107 = scmp.eq.s32.totalorder %s19, 0
      %p108 = por %p106, %p107
      %p109 = scmp.ne.s32.totalorder %s95, %s96
      %p110 = scmp.eq.s32.totalorder %s20, 1
      %p111 = por %p109, %p110
      %p113 = scmp.ne.s32.totalorder %s96, %s112
      %p114 = scmp.eq.s32.totalorder %s20, 0
      %p115 = por %p113, %p114
      %p116 = scmp.le.s32.totalorder 1, %s14
      %p117 = scmp.lt.s32.totalorder %s14, 3
      %p118 = pnand %p116, %p117
      %p119 = pneg %p118
      // Predicated region
      $region9: #{tpu_custom_call.1} parent=5 // pred_check
        _
      $region10: #{tpu_custom_call.1} parent=5 // pred_check_branch
        %121 = sbr.rel (%p118) target = $region12
      $region11: #{tpu_custom_call.1} parent=5 // pred_region
        %s122 = ssub.s32 %s14, 1
      $region12: #{tpu_custom_call.1} parent=5 // pred_fallthru
        _
      %p123 = scmp.lt.s32.totalorder %s14, 2
      // Predicated region
      $region13: #{tpu_custom_call.1} parent=5 // pred_check
        %p124 = pneg %p123
      $region14: #{tpu_custom_call.1} parent=5 // pred_check_branch
        %126 = sbr.rel (%p124) target = $region16
      $region15: #{tpu_custom_call.1} parent=5 // pred_region
        // Predicated region
        $region17: #{tpu_custom_call.1} parent=15 // pred_check
          %p127 = pneg %p48
        $region18: #{tpu_custom_call.1} parent=15 // pred_check_branch
          %129 = sbr.rel (%p127) target = $region20
        $region19: #{tpu_custom_call.1} parent=15 // pred_region
          %s130 = sand.u32 %s38, 1
          %s131 = scalar_lea.sflag [#allocation3], %s130
          %s132 = sand.u32 %s38, 1
          %s133 = smul.addr %s132, 512
          %s134 = scalar_lea.vmem [#allocation2], %s133
          %s135 = smul.u32 32, %s22
          %137 = vsyncadd %s131, 0
          %s138 = smul.addr %s21, 64
          %s139 = sadd.s32 %s135, %s138
          %s140 = smul.addr %s139, 8
          %s141 = scalar_lea.hbm %s0, %s140
          %s142 = sshll.u32 %s141, 4
          %s143 = int_to_ptr.hbm [resolvable:$true] %s142
          %s144 = sshll.u32 %s134, 4
          %s145 = int_to_ptr.vmem [resolvable:$true] %s144
          %150 = dma.hbm_to_vmem [thread:$0]  %s143, 8192, %s145, %s131, 4096, 4096, 256
        $region20: #{tpu_custom_call.1} parent=15 // pred_fallthru
          _
        // Predicated region
        $region21: #{tpu_custom_call.1} parent=15 // pred_check
          %p151 = pneg %p76
        $region22: #{tpu_custom_call.1} parent=15 // pred_check_branch
          %153 = sbr.rel (%p151) target = $region24
        $region23: #{tpu_custom_call.1} parent=15 // pred_region
          %s154 = sand.u32 %s66, 1
          %s155 = scalar_lea.sflag [#allocation5], %s154
          %s156 = sand.u32 %s66, 1
          %s157 = smul.addr %s156, 512
          %s158 = scalar_lea.vmem [#allocation4], %s157
          %s159 = smul.u32 32, %s22
          %161 = vsyncadd %s155, 0
          %s162 = smul.addr %s21, 64
          %s163 = sadd.s32 %s159, %s162
          %s164 = smul.addr %s163, 8
          %s165 = scalar_lea.hbm %s1, %s164
          %s166 = sshll.u32 %s165, 4
          %s167 = int_to_ptr.hbm [resolvable:$true] %s166
          %s168 = sshll.u32 %s158, 4
          %s169 = int_to_ptr.vmem [resolvable:$true] %s168
          %174 = dma.hbm_to_vmem [thread:$0]  %s167, 8192, %s169, %s155, 4096, 4096, 256
        $region24: #{tpu_custom_call.1} parent=15 // pred_fallthru
          _
      $region16: #{tpu_custom_call.1} parent=5 // pred_fallthru
        _
      %p175 = scmp.le.s32.totalorder 1, %s14
      %p176 = scmp.lt.s32.totalorder %s14, 3
      %p177 = pnand %p175, %p176
      %p178 = pneg %p177
      // Predicated region
      $region25: #{tpu_custom_call.1} parent=5 // pred_check
        _
      $region26: #{tpu_custom_call.1} parent=5 // pred_check_branch
        %180 = sbr.rel (%p177) target = $region28
      $region27: #{tpu_custom_call.1} parent=5 // pred_region
        %s181 = ssub.s32 %s14, 1
        %s182 = sand.u32 %s41, 1
        %s183 = scalar_lea.sflag [#allocation3], %s182
        %s184 = sand.u32 %s41, 1
        %s185 = smul.addr %s184, 512
        %s186 = scalar_lea.vmem [#allocation2], %s185
        // Predicated region
        $region29: #{tpu_custom_call.1} parent=27 // pred_check
          %p187 = pneg %p54
        $region30: #{tpu_custom_call.1} parent=27 // pred_check_branch
          %189 = sbr.rel (%p187) target = $region32
        $region31: #{tpu_custom_call.1} parent=27 // pred_region
          %191 = dma.done %s183, 8192
        $region32: #{tpu_custom_call.1} parent=27 // pred_fallthru
          _
        %s192 = sand.u32 %s69, 1
        %s193 = scalar_lea.sflag [#allocation5], %s192
        %s194 = sand.u32 %s69, 1
        %s195 = smul.addr %s194, 512
        %s196 = scalar_lea.vmem [#allocation4], %s195
        // Predicated region
        $region33: #{tpu_custom_call.1} parent=27 // pred_check
          %p197 = pneg %p82
        $region34: #{tpu_custom_call.1} parent=27 // pred_check_branch
          %199 = sbr.rel (%p197) target = $region36
        $region35: #{tpu_custom_call.1} parent=27 // pred_region
          %201 = dma.done %s193, 8192
        $region36: #{tpu_custom_call.1} parent=27 // pred_fallthru
          _
        %s202 = sand.u32 %s41, 1
        %s203 = scalar_lea.sflag [#allocation3], %s202
        %s204 = sand.u32 %s41, 1
        %s205 = smul.addr %s204, 512
        %s206 = scalar_lea.vmem [#allocation2], %s205
        %p207 = pneg %p54
        %p208 = pneg %p51
        %s209 = sand.u32 %s69, 1
        %s210 = scalar_lea.sflag [#allocation5], %s209
        %s211 = sand.u32 %s69, 1
        %s212 = smul.addr %s211, 512
        %s213 = scalar_lea.vmem [#allocation4], %s212
        %p214 = pneg %p82
        %p215 = pneg %p79
        %p216 = pneg %p108
        %p217 = pneg %p105
        %p218 = scmp.lt.s32.totalorder %s23, 1
        %s219 = scalar_select %p218, %s23, 1
        %s220 = smul.addr %s219, 4
        %s221 = smul.addr %s220, 8
        %s222 = scalar_lea.vmem %s2, %s221
        %s223 = smul.u32 32, %s24
        %s224 = smul.u32 32, %s24
        %p225 = scmp.lt.s32.totalorder %s23, 1
        %s226 = scalar_select %p225, %s23, 1
        %s227 = smul.addr %s226, 4
        %s228 = smul.addr %s227, 8
        %s229 = scalar_lea.vmem %s2, %s228
        %p230 = scmp.eq.s32.totalorder %s24, 0
        // Predicated region
        $region37: #{tpu_custom_call.1} parent=27 // pred_check
          %p231 = pneg %p230
        $region38: #{tpu_custom_call.1} parent=27 // pred_check_branch
          %233 = sbr.rel (%p231) target = $region40
        $region39: #{tpu_custom_call.1} parent=27 // pred_region
          %vm234 = vcmask 7168
          %235 = vst.msk [vmem:[%s229] sm:$0xff] %vm234, 0.0
          %236 = vst.msk [vmem:[%s229 + $0x8] sm:$0xff] %vm234, 0.0
          %237 = vst.msk [vmem:[%s229 + $0x10] sm:$0xff] %vm234, 0.0
          %238 = vst.msk [vmem:[%s229 + $0x18] sm:$0xff] %vm234, 0.0
        $region40: #{tpu_custom_call.1} parent=27 // pred_fallthru
          _
        %v239 = vld [vmem:[%s186] sm:$0xff]
        %v240 = vld [vmem:[%s186 + $0x8] sm:$0xff]
        %v241 = vld [vmem:[%s186 + $0x10] sm:$0xff]
        %v242 = vld [vmem:[%s186 + $0x18] sm:$0xff]
        %v243 = vld [vmem:[%s186 + $0x20] sm:$0xff]
        %v244 = vld [vmem:[%s186 + $0x28] sm:$0xff]
        %v245 = vld [vmem:[%s186 + $0x30] sm:$0xff]
        %v246 = vld [vmem:[%s186 + $0x38] sm:$0xff]
        %v247 = vld [vmem:[%s186 + $0x40] sm:$0xff]
        %v248 = vld [vmem:[%s186 + $0x48] sm:$0xff]
        %v249 = vld [vmem:[%s186 + $0x50] sm:$0xff]
        %v250 = vld [vmem:[%s186 + $0x58] sm:$0xff]
        %v251 = vld [vmem:[%s186 + $0x60] sm:$0xff]
        %v252 = vld [vmem:[%s186 + $0x68] sm:$0xff]
        %v253 = vld [vmem:[%s186 + $0x70] sm:$0xff]
        %v254 = vld [vmem:[%s186 + $0x78] sm:$0xff]
        %v255 = vld [vmem:[%s186 + $0x80] sm:$0xff]
        %v256 = vld [vmem:[%s186 + $0x88] sm:$0xff]
        %v257 = vld [vmem:[%s186 + $0x90] sm:$0xff]
        %v258 = vld [vmem:[%s186 + $0x98] sm:$0xff]
        %v259 = vld [vmem:[%s186 + $0xa0] sm:$0xff]
        %v260 = vld [vmem:[%s186 + $0xa8] sm:$0xff]
        %v261 = vld [vmem:[%s186 + $0xb0] sm:$0xff]
        %v262 = vld [vmem:[%s186 + $0xb8] sm:$0xff]
        %v263 = vld [vmem:[%s186 + $0xc0] sm:$0xff]
        %v264 = vld [vmem:[%s186 + $0xc8] sm:$0xff]
        %v265 = vld [vmem:[%s186 + $0xd0] sm:$0xff]
        %v266 = vld [vmem:[%s186 + $0xd8] sm:$0xff]
        %v267 = vld [vmem:[%s186 + $0xe0] sm:$0xff]
        %v268 = vld [vmem:[%s186 + $0xe8] sm:$0xff]
        %v269 = vld [vmem:[%s186 + $0xf0] sm:$0xff]
        %v270 = vld [vmem:[%s186 + $0xf8] sm:$0xff]
        %v271 = vld [vmem:[%s186 + $0x100] sm:$0xff]
        %v272 = vld [vmem:[%s186 + $0x108] sm:$0xff]
        %v273 = vld [vmem:[%s186 + $0x110] sm:$0xff]
        %v274 = vld [vmem:[%s186 + $0x118] sm:$0xff]
        %v275 = vld [vmem:[%s186 + $0x120] sm:$0xff]
        %v276 = vld [vmem:[%s186 + $0x128] sm:$0xff]
        %v277 = vld [vmem:[%s186 + $0x130] sm:$0xff]
        %v278 = vld [vmem:[%s186 + $0x138] sm:$0xff]
        %v279 = vld [vmem:[%s186 + $0x140] sm:$0xff]
        %v280 = vld [vmem:[%s186 + $0x148] sm:$0xff]
        %v281 = vld [vmem:[%s186 + $0x150] sm:$0xff]
        %v282 = vld [vmem:[%s186 + $0x158] sm:$0xff]
        %v283 = vld [vmem:[%s186 + $0x160] sm:$0xff]
        %v284 = vld [vmem:[%s186 + $0x168] sm:$0xff]
        %v285 = vld [vmem:[%s186 + $0x170] sm:$0xff]
        %v286 = vld [vmem:[%s186 + $0x178] sm:$0xff]
        %v287 = vld [vmem:[%s186 + $0x180] sm:$0xff]
        %v288 = vld [vmem:[%s186 + $0x188] sm:$0xff]
        %v289 = vld [vmem:[%s186 + $0x190] sm:$0xff]
        %v290 = vld [vmem:[%s186 + $0x198] sm:$0xff]
        %v291 = vld [vmem:[%s186 + $0x1a0] sm:$0xff]
        %v292 = vld [vmem:[%s186 + $0x1a8] sm:$0xff]
        %v293 = vld [vmem:[%s186 + $0x1b0] sm:$0xff]
        %v294 = vld [vmem:[%s186 + $0x1b8] sm:$0xff]
        %v295 = vld [vmem:[%s186 + $0x1c0] sm:$0xff]
        %v296 = vld [vmem:[%s186 + $0x1c8] sm:$0xff]
        %v297 = vld [vmem:[%s186 + $0x1d0] sm:$0xff]
        %v298 = vld [vmem:[%s186 + $0x1d8] sm:$0xff]
        %v299 = vld [vmem:[%s186 + $0x1e0] sm:$0xff]
        %v300 = vld [vmem:[%s186 + $0x1e8] sm:$0xff]
        %v301 = vld [vmem:[%s186 + $0x1f0] sm:$0xff]
        %v302 = vld [vmem:[%s186 + $0x1f8] sm:$0xff]
        %v303 = vld [vmem:[%s196] sm:$0xff]
        %v304 = vld [vmem:[%s196 + $0x8] sm:$0xff]
        %v305 = vld [vmem:[%s196 + $0x10] sm:$0xff]
        %v306 = vld [vmem:[%s196 + $0x18] sm:$0xff]
        %v307 = vld [vmem:[%s196 + $0x20] sm:$0xff]
        %v308 = vld [vmem:[%s196 + $0x28] sm:$0xff]
        %v309 = vld [vmem:[%s196 + $0x30] sm:$0xff]
        %v310 = vld [vmem:[%s196 + $0x38] sm:$0xff]
        %v311 = vld [vmem:[%s196 + $0x40] sm:$0xff]
        %v312 = vld [vmem:[%s196 + $0x48] sm:$0xff]
        %v313 = vld [vmem:[%s196 + $0x50] sm:$0xff]
        %v314 = vld [vmem:[%s196 + $0x58] sm:$0xff]
        %v315 = vld [vmem:[%s196 + $0x60] sm:$0xff]
        %v316 = vld [vmem:[%s196 + $0x68] sm:$0xff]
        %v317 = vld [vmem:[%s196 + $0x70] sm:$0xff]
        %v318 = vld [vmem:[%s196 + $0x78] sm:$0xff]
        %v319 = vld [vmem:[%s196 + $0x80] sm:$0xff]
        %v320 = vld [vmem:[%s196 + $0x88] sm:$0xff]
        %v321 = vld [vmem:[%s196 + $0x90] sm:$0xff]
        %v322 = vld [vmem:[%s196 + $0x98] sm:$0xff]
        %v323 = vld [vmem:[%s196 + $0xa0] sm:$0xff]
        %v324 = vld [vmem:[%s196 + $0xa8] sm:$0xff]
        %v325 = vld [vmem:[%s196 + $0xb0] sm:$0xff]
        %v326 = vld [vmem:[%s196 + $0xb8] sm:$0xff]
        %v327 = vld [vmem:[%s196 + $0xc0] sm:$0xff]
        %v328 = vld [vmem:[%s196 + $0xc8] sm:$0xff]
        %v329 = vld [vmem:[%s196 + $0xd0] sm:$0xff]
        %v330 = vld [vmem:[%s196 + $0xd8] sm:$0xff]
        %v331 = vld [vmem:[%s196 + $0xe0] sm:$0xff]
        %v332 = vld [vmem:[%s196 + $0xe8] sm:$0xff]
        %v333 = vld [vmem:[%s196 + $0xf0] sm:$0xff]
        %v334 = vld [vmem:[%s196 + $0xf8] sm:$0xff]
        %v335 = vld [vmem:[%s196 + $0x100] sm:$0xff]
        %v336 = vld [vmem:[%s196 + $0x108] sm:$0xff]
        %v337 = vld [vmem:[%s196 + $0x110] sm:$0xff]
        %v338 = vld [vmem:[%s196 + $0x118] sm:$0xff]
        %v339 = vld [vmem:[%s196 + $0x120] sm:$0xff]
        %v340 = vld [vmem:[%s196 + $0x128] sm:$0xff]
        %v341 = vld [vmem:[%s196 + $0x130] sm:$0xff]
        %v342 = vld [vmem:[%s196 + $0x138] sm:$0xff]
        %v343 = vld [vmem:[%s196 + $0x140] sm:$0xff]
        %v344 = vld [vmem:[%s196 + $0x148] sm:$0xff]
        %v345 = vld [vmem:[%s196 + $0x150] sm:$0xff]
        %v346 = vld [vmem:[%s196 + $0x158] sm:$0xff]
        %v347 = vld [vmem:[%s196 + $0x160] sm:$0xff]
        %v348 = vld [vmem:[%s196 + $0x168] sm:$0xff]
        %v349 = vld [vmem:[%s196 + $0x170] sm:$0xff]
        %v350 = vld [vmem:[%s196 + $0x178] sm:$0xff]
        %v351 = vld [vmem:[%s196 + $0x180] sm:$0xff]
        %v352 = vld [vmem:[%s196 + $0x188] sm:$0xff]
        %v353 = vld [vmem:[%s196 + $0x190] sm:$0xff]
        %v354 = vld [vmem:[%s196 + $0x198] sm:$0xff]
        %v355 = vld [vmem:[%s196 + $0x1a0] sm:$0xff]
        %v356 = vld [vmem:[%s196 + $0x1a8] sm:$0xff]
        %v357 = vld [vmem:[%s196 + $0x1b0] sm:$0xff]
        %v358 = vld [vmem:[%s196 + $0x1b8] sm:$0xff]
        %v359 = vld [vmem:[%s196 + $0x1c0] sm:$0xff]
        %v360 = vld [vmem:[%s196 + $0x1c8] sm:$0xff]
        %v361 = vld [vmem:[%s196 + $0x1d0] sm:$0xff]
        %v362 = vld [vmem:[%s196 + $0x1d8] sm:$0xff]
        %v363 = vld [vmem:[%s196 + $0x1e0] sm:$0xff]
        %v364 = vld [vmem:[%s196 + $0x1e8] sm:$0xff]
        %v365 = vld [vmem:[%s196 + $0x1f0] sm:$0xff]
        %v366 = vld [vmem:[%s196 + $0x1f8] sm:$0xff]
        %v367 = vld [vmem:[%s229] sm:$0xff]
        %v368 = vld [vmem:[%s229 + $0x8] sm:$0xff]
        %v369 = vadd.f32 %v239, %v240
        %v370 = vadd.f32 %v369, %v241
        %v371 = vadd.f32 %v370, %v242
        %v372 = vadd.f32 %v371, %v243
        %v373 = vadd.f32 %v372, %v244
        %v374 = vadd.f32 %v373, %v245
        %v375 = vadd.f32 %v374, %v246
        %v376 = vadd.f32 %v375, %v247
        %v377 = vadd.f32 %v376, %v248
        %v378 = vadd.f32 %v377, %v249
        %v379 = vadd.f32 %v378, %v250
        %v380 = vadd.f32 %v379, %v251
        %v381 = vadd.f32 %v380, %v252
        %v382 = vadd.f32 %v381, %v253
        %v383 = vadd.f32 %v382, %v254
        %v384 = vadd.f32 %v383, %v255
        %v385 = vadd.f32 %v384, %v256
        %v386 = vadd.f32 %v385, %v257
        %v387 = vadd.f32 %v386, %v258
        %v388 = vadd.f32 %v387, %v259
        %v389 = vadd.f32 %v388, %v260
        %v390 = vadd.f32 %v389, %v261
        %v391 = vadd.f32 %v390, %v262
        %v392 = vadd.f32 %v391, %v263
        %v393 = vadd.f32 %v392, %v264
        %v394 = vadd.f32 %v393, %v265
        %v395 = vadd.f32 %v394, %v266
        %v396 = vadd.f32 %v395, %v267
        %v397 = vadd.f32 %v396, %v268
        %v398 = vadd.f32 %v397, %v269
        %v399 = vadd.f32 %v398, %v270
        %400 = vadd.xlane.f32.xlu0 %v399
        %v401 = vpop.xlane.xlu0 %400
        %v402 = vadd.f32 %v271, %v272
        %v403 = vadd.f32 %v402, %v273
        %v404 = vadd.f32 %v403, %v274
        %v405 = vadd.f32 %v404, %v275
        %v406 = vadd.f32 %v405, %v276
        %v407 = vadd.f32 %v406, %v277
        %v408 = vadd.f32 %v407, %v278
        %v409 = vadd.f32 %v408, %v279
        %v410 = vadd.f32 %v409, %v280
        %v411 = vadd.f32 %v410, %v281
        %v412 = vadd.f32 %v411, %v282
        %v413 = vadd.f32 %v412, %v283
        %v414 = vadd.f32 %v413, %v284
        %v415 = vadd.f32 %v414, %v285
        %v416 = vadd.f32 %v415, %v286
        %v417 = vadd.f32 %v416, %v287
        %v418 = vadd.f32 %v417, %v288
        %v419 = vadd.f32 %v418, %v289
        %v420 = vadd.f32 %v419, %v290
        %v421 = vadd.f32 %v420, %v291
        %v422 = vadd.f32 %v421, %v292
        %v423 = vadd.f32 %v422, %v293
        %v424 = vadd.f32 %v423, %v294
        %v425 = vadd.f32 %v424, %v295
        %v426 = vadd.f32 %v425, %v296
        %v427 = vadd.f32 %v426, %v297
        %v428 = vadd.f32 %v427, %v298
        %v429 = vadd.f32 %v428, %v299
        %v430 = vadd.f32 %v429, %v300
        %v431 = vadd.f32 %v430, %v301
        %v432 = vadd.f32 %v431, %v302
        %433 = vadd.xlane.f32.xlu0 %v432
        %v434 = vpop.xlane.xlu0 %433
        %v435 = vadd.f32 %v367, %v401
        %v436 = vadd.f32 %v368, %v434
        %vm437 = vcmask 7168
        %438 = vst.msk [vmem:[%s229] sm:$0xff] %vm437, %v435
        %439 = vst.msk [vmem:[%s229 + $0x8] sm:$0xff] %vm437, %v436
        %v440 = vld [vmem:[%s229 + $0x10] sm:$0xff]
        %v441 = vld [vmem:[%s229 + $0x18] sm:$0xff]
        %v442 = vadd.f32 %v303, %v304
        %v443 = vadd.f32 %v442, %v305
        %v444 = vadd.f32 %v443, %v306
        %v445 = vadd.f32 %v444, %v307
        %v446 = vadd.f32 %v445, %v308
        %v447 = vadd.f32 %v446, %v309
        %v448 = vadd.f32 %v447, %v310
        %v449 = vadd.f32 %v448, %v311
        %v450 = vadd.f32 %v449, %v312
        %v451 = vadd.f32 %v450, %v313
        %v452 = vadd.f32 %v451, %v314
        %v453 = vadd.f32 %v452, %v315
        %v454 = vadd.f32 %v453, %v316
        %v455 = vadd.f32 %v454, %v317
        %v456 = vadd.f32 %v455, %v318
        %v457 = vadd.f32 %v456, %v319
        %v458 = vadd.f32 %v457, %v320
        %v459 = vadd.f32 %v458, %v321
        %v460 = vadd.f32 %v459, %v322
        %v461 = vadd.f32 %v460, %v323
        %v462 = vadd.f32 %v461, %v324
        %v463 = vadd.f32 %v462, %v325
        %v464 = vadd.f32 %v463, %v326
        %v465 = vadd.f32 %v464, %v327
        %v466 = vadd.f32 %v465, %v328
        %v467 = vadd.f32 %v466, %v329
        %v468 = vadd.f32 %v467, %v330
        %v469 = vadd.f32 %v468, %v331
        %v470 = vadd.f32 %v469, %v332
        %v471 = vadd.f32 %v470, %v333
        %v472 = vadd.f32 %v471, %v334
        %473 = vadd.xlane.f32.xlu0 %v472
        %v474 = vpop.xlane.xlu0 %473
        %v475 = vadd.f32 %v335, %v336
        %v476 = vadd.f32 %v475, %v337
        %v477 = vadd.f32 %v476, %v338
        %v478 = vadd.f32 %v477, %v339
        %v479 = vadd.f32 %v478, %v340
        %v480 = vadd.f32 %v479, %v341
        %v481 = vadd.f32 %v480, %v342
        %v482 = vadd.f32 %v481, %v343
        %v483 = vadd.f32 %v482, %v344
        %v484 = vadd.f32 %v483, %v345
        %v485 = vadd.f32 %v484, %v346
        %v486 = vadd.f32 %v485, %v347
        %v487 = vadd.f32 %v486, %v348
        %v488 = vadd.f32 %v487, %v349
        %v489 = vadd.f32 %v488, %v350
        %v490 = vadd.f32 %v489, %v351
        %v491 = vadd.f32 %v490, %v352
        %v492 = vadd.f32 %v491, %v353
        %v493 = vadd.f32 %v492, %v354
        %v494 = vadd.f32 %v493, %v355
        %v495 = vadd.f32 %v494, %v356
        %v496 = vadd.f32 %v495, %v357
        %v497 = vadd.f32 %v496, %v358
        %v498 = vadd.f32 %v497, %v359
        %v499 = vadd.f32 %v498, %v360
        %v500 = vadd.f32 %v499, %v361
        %v501 = vadd.f32 %v500, %v362
        %v502 = vadd.f32 %v501, %v363
        %v503 = vadd.f32 %v502, %v364
        %v504 = vadd.f32 %v503, %v365
        %v505 = vadd.f32 %v504, %v366
        %506 = vadd.xlane.f32.xlu0 %v505
        %v507 = vpop.xlane.xlu0 %506
        %v508 = vadd.f32 %v440, %v474
        %v509 = vadd.f32 %v441, %v507
        %510 = vst.msk [vmem:[%s229 + $0x10] sm:$0xff] %vm437, %v508
        %511 = vst.msk [vmem:[%s229 + $0x18] sm:$0xff] %vm437, %v509
        %p512 = scmp.lt.s32.totalorder %s23, 1
        %s513 = scalar_select %p512, %s23, 1
        %s514 = smul.addr %s513, 4
        %s515 = smul.addr %s514, 8
        %s516 = scalar_lea.vmem %s2, %s515
        // Predicated region
        $region41: #{tpu_custom_call.1} parent=27 // pred_check
          %p517 = pneg %p105
        $region42: #{tpu_custom_call.1} parent=27 // pred_check_branch
          %519 = sbr.rel (%p517) target = $region44
        $region43: #{tpu_custom_call.1} parent=27 // pred_region
          _
        $region44: #{tpu_custom_call.1} parent=27 // pred_fallthru
          _
      $region28: #{tpu_custom_call.1} parent=5 // pred_fallthru
        _
      %p520 = scmp.le.s32.totalorder 2, %s14
      // Predicated region
      $region45: #{tpu_custom_call.1} parent=5 // pred_check
        %p521 = pneg %p520
      $region46: #{tpu_custom_call.1} parent=5 // pred_check_branch
        %523 = sbr.rel (%p521) target = $region48
      $region47: #{tpu_custom_call.1} parent=5 // pred_region
        %s524 = ssub.s32 %s14, 2
        // Predicated region
        $region49: #{tpu_custom_call.1} parent=47 // pred_check
          %p525 = pneg %p111
        $region50: #{tpu_custom_call.1} parent=47 // pred_check_branch
          %527 = sbr.rel (%p525) target = $region52
        $region51: #{tpu_custom_call.1} parent=47 // pred_region
          %p528 = scmp.lt.s32.totalorder %s25, 1
          %s529 = scalar_select %p528, %s25, 1
          %s530 = smul.addr %s529, 4
          %s531 = smul.addr %s530, 8
          %s532 = scalar_lea.vmem %s2, %s531
        $region52: #{tpu_custom_call.1} parent=47 // pred_fallthru
          _
      $region48: #{tpu_custom_call.1} parent=5 // pred_fallthru
        _
    $region6: #{tpu_custom_call.1} parent=1 // loop_footer
      %s18 = sadd.s32 1, %s14
    $region7: #{tpu_custom_call.1} parent=1 // loop_footer_branch
      %13 = sbr.rel target = $region3
    $region8: #{tpu_custom_call.1} parent=1 // loop_exit
      _
    %533 = vsyncpa [#allocation3], 1
    %s534 = scalar_lea.sflag [#allocation3], 1
    %535 = vsyncpa %s534, 1
    %536 = vsyncpa [#allocation5], 1
    %s537 = scalar_lea.sflag [#allocation5], 1
    %538 = vsyncpa %s537, 1

</llo_original>
